<compile_context>
chip_gen: v6e
topology: v6e:2x2x1
jax: 0.10.0
libtpu: 0.0.40
codegen_flags: <defaults>
</compile_context>

<pallas_src>
import jax
import jax.numpy as jnp
from jax import lax
from jax.experimental import pallas as pl
from jax.experimental.pallas import tpu as pltpu


_EPS = 1e-6
_LANES = 128
_MAX_BLOCK_ROWS = 8192  # 8192 x 128 x 4B = 4 MiB per f32 block (v7x-safe when double-buffered)
_INV_SQRT2 = 0.7071067811865476


def _gelu_exact(x):
    # exact GELU: 0.5 * x * (1 + erf(x / sqrt(2)))  (torch.nn.GELU default)
    return 0.5 * x * (1.0 + lax.erf(x * _INV_SQRT2))


def activation_xai_kernel(x_ref, o_ref):
    x = x_ref[...]
    xf = x.astype(jnp.float32)          # compute in f32 (v5e-safe for bf16 inputs)
    act = _gelu_exact(xf)
    d = xf + _EPS
    # EUP approximate reciprocal + one Newton-Raphson step (full f32 precision).
    r = pl.reciprocal(d, approx=True)
    r = r * (2.0 - d * r)
    o_ref[...] = (xf * act * r).astype(o_ref.dtype)


def activation_xai(x):
    """x: any-shaped float array (here NCHW). Returns same shape/dtype."""
    orig_shape = x.shape
    orig_dtype = x.dtype
    n = x.size

    # Alignment: rows must be a multiple of 8 sublanes (16 for bf16 packing).
    sublane = 16 if orig_dtype == jnp.bfloat16 else 8
    min_tile = sublane * _LANES

    x_flat = jnp.ravel(x)                       # contiguous reshape: free
    n_pad = ((n + min_tile - 1) // min_tile) * min_tile
    padded = n_pad != n
    if padded:
        # Pad with 1s (1 + eps is far from 0, so no spurious Inf in padding).
        x_flat = jnp.concatenate([x_flat, jnp.ones((n_pad - n,), dtype=orig_dtype)])

    rows = n_pad // _LANES
    x2d = x_flat.reshape(rows, _LANES)

    # Block selection: single grid step for small/medium inputs; 4 MiB blocks
    # (with a cdiv grid, out-of-bounds tail handled by Pallas clipping) for big ones.
    if rows <= _MAX_BLOCK_ROWS:
        block_rows = rows
    else:
        block_rows = _MAX_BLOCK_ROWS
    grid = (pl.cdiv(rows, block_rows),)

    out2d = pl.pallas_call(
        activation_xai_kernel,
        out_shape=jax.ShapeDtypeStruct((rows, _LANES), orig_dtype),
        grid_spec=pltpu.PrefetchScalarGridSpec(
            num_scalar_prefetch=0,
            grid=grid,
            in_specs=[pl.BlockSpec((block_rows, _LANES), lambda i: (i, 0))],
            out_specs=pl.BlockSpec((block_rows, _LANES), lambda i: (i, 0)),
        ),
        compiler_params=pltpu.CompilerParams(
            dimension_semantics=("parallel",),
            vmem_limit_bytes=32 * 1024 * 1024,
        ),
    )(x2d)

    out_flat = out2d.reshape(-1)
    if padded:
        out_flat = out_flat[:n]                 # slice only when we actually padded
    return out_flat.reshape(orig_shape)


def activation_xai_ref(x):
    """Pure-JAX reference matching the PyTorch forward values."""
    xf = x.astype(jnp.float32)
    act = 0.5 * xf * (1.0 + lax.erf(xf * _INV_SQRT2))
    return (xf * (act / (xf + _EPS))).astype(x.dtype)


if __name__ == "__main__":
    key = jax.random.PRNGKey(0)

    # Primary test: the module's NCHW activation tensor (2, 4, 16, 16).
    x = jax.random.normal(key, (2, 4, 16, 16), dtype=jnp.float32)
    out = activation_xai(x)
    jax.block_until_ready(out)
    ref = activation_xai_ref(x)
    assert out.shape == x.shape and out.dtype == x.dtype
    assert jnp.allclose(out, ref, atol=1e-5, rtol=1e-5), float(jnp.max(jnp.abs(out - ref)))

    # Secondary test: awkward size to exercise the (rare) pad/slice path.
    x2 = jax.random.normal(jax.random.PRNGKey(1), (3, 5, 7, 11), dtype=jnp.float32)
    out2 = activation_xai(x2)
    jax.block_until_ready(out2)
    ref2 = activation_xai_ref(x2)
    assert jnp.allclose(out2, ref2, atol=1e-5, rtol=1e-5), float(jnp.max(jnp.abs(out2 - ref2)))

    print("KERNEL_OK")
</pallas_src>

<mosaic_0001>
module attributes {stable_mosaic.version = 11 : i64} {
  func.func @activation_xai_kernel(%arg0: i32, %arg1: memref<16x128xf32, #tpu.memory_space<vmem>>, %arg2: memref<16x128xf32, #tpu.memory_space<vmem>>) attributes {dimension_semantics = [#tpu.dimension_semantics<parallel>], iteration_bounds = array<i64: 1>, scalar_prefetch = 0 : i64, scratch_operands = 0 : i64, tpu.core_type = #tpu.core_type<tc>, window_params = [{transform_indices = @transform_0, window_bounds = array<i64: 16, 128>}, {transform_indices = @transform_1, window_bounds = array<i64: 16, 128>}]} {
    %c0 = arith.constant 0 : index
    %c0_0 = arith.constant 0 : index
    %0 = vector.load %arg1[%c0, %c0_0] : memref<16x128xf32, #tpu.memory_space<vmem>>, vector<16x128xf32>
    %cst = arith.constant 5.000000e-01 : f32
    %1 = vector.broadcast %cst : f32 to vector<16x128xf32>
    %2 = arith.mulf %1, %0 : vector<16x128xf32>
    %cst_1 = arith.constant 0.707106769 : f32
    %3 = vector.broadcast %cst_1 : f32 to vector<16x128xf32>
    %4 = arith.mulf %0, %3 : vector<16x128xf32>
    %5 = math.erf %4 : vector<16x128xf32>
    %cst_2 = arith.constant 1.000000e+00 : f32
    %6 = vector.broadcast %cst_2 : f32 to vector<16x128xf32>
    %7 = arith.addf %6, %5 : vector<16x128xf32>
    %8 = arith.mulf %2, %7 : vector<16x128xf32>
    %cst_3 = arith.constant 9.99999997E-7 : f32
    %9 = vector.broadcast %cst_3 : f32 to vector<16x128xf32>
    %10 = arith.addf %0, %9 : vector<16x128xf32>
    %11 = tpu.reciprocal %10 {approx = true} : vector<16x128xf32> -> vector<16x128xf32>
    %12 = arith.mulf %10, %11 : vector<16x128xf32>
    %cst_4 = arith.constant 2.000000e+00 : f32
    %13 = vector.broadcast %cst_4 : f32 to vector<16x128xf32>
    %14 = arith.subf %13, %12 : vector<16x128xf32>
    %15 = arith.mulf %11, %14 : vector<16x128xf32>
    %16 = arith.mulf %0, %8 : vector<16x128xf32>
    %17 = arith.mulf %16, %15 : vector<16x128xf32>
    %c0_5 = arith.constant 0 : index
    %c0_6 = arith.constant 0 : index
    %18 = vector.load %arg2[%c0_5, %c0_6] : memref<16x128xf32, #tpu.memory_space<vmem>>, vector<16x128xf32>
    tpu.vector_store %arg2[%c0_5, %c0_6], %17 {strides = array<i32>} : memref<16x128xf32, #tpu.memory_space<vmem>>, vector<16x128xf32>,
    return
  }
  func.func @transform_0(%arg0: i32) -> (i32, i32) {
    %c0_i32 = arith.constant 0 : i32
    %c0_i32_0 = arith.constant 0 : i32
    return %arg0, %c0_i32 : i32, i32
  }
  func.func @transform_1(%arg0: i32) -> (i32, i32) {
    %c0_i32 = arith.constant 0 : i32
    %c0_i32_0 = arith.constant 0 : i32
    return %arg0, %c0_i32 : i32, i32
  }
}

</mosaic_0001>

<llo_original>
// kernel: tpu_custom_call.1
$region0: #{tpu_custom_call.1}
  #allocation0 [shape = 'u32[]', space=smem, size = 0x4, offset = 0x4, fixed_abs, tag = 'smem constant byte address 0x4 - core index']
  #allocation1 [shape = 'u32[144,128]{1,0:T(1,128)}', space=vmem, size = 0x12000, scoped, tag = 'internal scratch']
  %s0 = inlined_call_operand.hbm [shape: f32[16,128], index: 0, kind: input, shape index: {}]
  %s1 = inlined_call_operand.hbm [shape: f32[16,128], index: 1, kind: output, shape index: {}]
  %s2 = sld [smem:[#allocation0]]
  $region18: #{tpu_custom_call.1} parent=0
    _
  %s4 = ssub.s32 1, %s2
  %s5 = scalar_select 0, %s4, %s2
  $region1: #{tpu_custom_call.1} parent=0
    #allocation2 [shape = 'u8[8192]{0}', space=vmem, size = 0x2000, scoped, tag = 'input window, operand 0, single buffered']
    #allocation3 [shape = 's32[1]{0}', space=sflag, size = 0x4, scoped, tag = 'scoped memory for tpu_custom_call.1']
    #allocation4 [shape = 's32[1]{0}', space=sflag, size = 0x4, scoped, tag = 'scoped memory for tpu_custom_call.1']
    #allocation5 [shape = 'u8[8192]{0}', space=vmem, size = 0x2000, scoped, tag = 'output window, operand 0, single buffered']
    %6 = vsyncpa [#allocation3], 0
    %7 = vsyncpa [#allocation4], 0
    // Predicated region
    $region2: #{tpu_custom_call.1} parent=1 // pred_check
      _
    $region3: #{tpu_custom_call.1} parent=1 // pred_check_branch
      %9 = sbr.rel (0) target = $region5
    $region4: #{tpu_custom_call.1} parent=1 // pred_region
      %s11 = ssub.s32 256, 256
      %12 = vsyncadd [#allocation3], %s11
      %s13 = sshll.u32 [#allocation2], 4
      %s14 = int_to_ptr.vmem [resolvable:$true] %s13
      %19 = dma.hbm_to_vmem [thread:$0]  %s0, 256, %s14, [#allocation3], 128, 128, 8
    $region5: #{tpu_custom_call.1} parent=1 // pred_fallthru
      _
    // Predicated region
    $region6: #{tpu_custom_call.1} parent=1 // pred_check
      _
    $region7: #{tpu_custom_call.1} parent=1 // pred_check_branch
      %21 = sbr.rel (0) target = $region9
    $region8: #{tpu_custom_call.1} parent=1 // pred_region
      %22 = dma.done [#allocation3], 256
    $region9: #{tpu_custom_call.1} parent=1 // pred_fallthru
      _
    %v23 = vld [vmem:[#allocation2] sm:$0xff]
    %v24 = vld [vmem:[#allocation2 + $0x8] sm:$0xff]
    %v25 = vmul.f32 %v23, 0.5
    %v26 = vmul.f32 %v24, 0.5
    %v27 = vmul.f32 %v23, 0.70710677
    %v28 = vmul.f32 %v24, 0.70710677
    %v29 = verf.f32.pop %v27
    %v30 = verf.f32.pop %v28
    %v31 = vadd.f32 %v29, 1.0
    %v32 = vadd.f32 %v30, 1.0
    %v33 = vmul.f32 %v25, %v31
    %v34 = vmul.f32 %v26, %v32
    %v35 = vadd.f32 %v23, 1e-06
    %v36 = vadd.f32 %v24, 1e-06
    %v37 = vrcp.pop %v35
    %v38 = vrcp.pop %v36
    %v39 = vmul.f32 %v35, %v37
    %v40 = vmul.f32 %v36, %v38
    %v41 = vsub.f32 2.0, %v39
    %v42 = vsub.f32 2.0, %v40
    %v43 = vmul.f32 %v37, %v41
    %v44 = vmul.f32 %v38, %v42
    %v45 = vmul.f32 %v23, %v33
    %v46 = vmul.f32 %v24, %v34
    %v47 = vmul.f32 %v45, %v43
    %v48 = vmul.f32 %v46, %v44
    %49 = vst [vmem:[#allocation5] sm:$0xff] %v47
    %50 = vst [vmem:[#allocation5 + $0x8] sm:$0xff] %v48
    // Predicated region
    $region10: #{tpu_custom_call.1} parent=1 // pred_check
      _
    $region11: #{tpu_custom_call.1} parent=1 // pred_check_branch
      %52 = sbr.rel (0) target = $region13
    $region12: #{tpu_custom_call.1} parent=1 // pred_region
      %s54 = ssub.s32 256, 256
      %55 = vsyncadd [#allocation4], %s54
      %s56 = sshll.u32 [#allocation5], 4
      %s57 = int_to_ptr.vmem [resolvable:$true] %s56
      %62 = dma.vmem_to_hbm [thread:$0]  %s57, 256, %s1, [#allocation4], 128, 128, 8
    $region13: #{tpu_custom_call.1} parent=1 // pred_fallthru
      _
    // Predicated region
    $region14: #{tpu_custom_call.1} parent=1 // pred_check
      _
    $region15: #{tpu_custom_call.1} parent=1 // pred_check_branch
      %64 = sbr.rel (0) target = $region17
    $region16: #{tpu_custom_call.1} parent=1 // pred_region
      %65 = dma.done [#allocation4], 256
    $region17: #{tpu_custom_call.1} parent=1 // pred_fallthru
      _
    %66 = vsyncpa [#allocation3], 1
    %67 = vsyncpa [#allocation4], 1

</llo_original>
